<compile_context>
chip_gen: v5e
topology: v5e:2x2
jax: 0.10.0
libtpu: 0.0.40
codegen_flags: <defaults>
</compile_context>

<pallas_src>
import functools

import jax
import jax.numpy as jnp
from jax.experimental import pallas as pl
from jax.experimental.pallas import tpu as pltpu


def _sigmoid(x):
    # Explicit logistic; identical formula used in kernel and reference.
    return 1.0 / (1.0 + jnp.exp(-x))


def _soft_dice_kernel(l_ref, t_ref, acc_ref, *, nkpc, tile_d, d_valid, needs_mask):
    """Accumulates per-row [sum(sigmoid(l)*t), sum(sigmoid(l)+t)] over feature tiles."""
    k = pl.program_id(1)

    @pl.when(k == 0)
    def _():
        acc_ref[...] = jnp.zeros_like(acc_ref)

    p = _sigmoid(l_ref[...].astype(jnp.float32))
    t = t_ref[...].astype(jnp.float32)

    def _accumulate(pv, tv):
        acc_ref[:, 0:1] += jnp.sum(pv * tv, axis=1, keepdims=True)
        acc_ref[:, 1:2] += jnp.sum(pv + tv, axis=1, keepdims=True)

    if needs_mask:
        # Global chunk index = core offset + local step. Only edge chunks
        # (ragged last tile, or the duplicated clamped chunk of an odd split)
        # pay for the iota/compare/select; interior chunks are unmasked.
        gk = pl.program_id(0) * nkpc + k
        is_edge = (gk + 1) * tile_d > d_valid

        @pl.when(is_edge)
        def _():
            col = gk * tile_d + jax.lax.broadcasted_iota(jnp.int32, p.shape, 1)
            valid = col < d_valid
            # jnp.where (not mask-multiply) is NaN-safe for the undefined
            # out-of-bounds values of the padded edge block.
            _accumulate(jnp.where(valid, p, 0.0), jnp.where(valid, t, 0.0))

        @pl.when(jnp.logical_not(is_edge))
        def _():
            _accumulate(p, t)
    else:
        _accumulate(p, t)


def _pick_subrows(num, d, max_r=64):
    """Smallest R with D % R == 0 and (N*R) % 8 == 0 (fills vreg sublanes)."""
    for r in range(1, max_r + 1):
        if d % r == 0 and (num * r) % 8 == 0:
            return r
    return 1


def _physical_vmem_bytes():
    """Physical VMEM per TensorCore (generation aware), with a safe fallback."""
    cap = 64 * 1024 * 1024  # conservative (v7x per-TC minimum)
    try:
        info = pltpu.get_tpu_info()
        cap = int(getattr(info, "vmem_capacity_bytes", cap))
    except Exception:
        pass
    return cap


def _vmem_budget_bytes(phys_cap):
    """Budget for the double-buffered input blocks."""
    # Keep well under the 64 MiB v7x part; plenty of headroom on v5e/v6e (128 MiB).
    return max(8 * 1024 * 1024, min(phys_cap * 3 // 8, 24 * 1024 * 1024))


def _num_tensorcores():
    """v7x packs 2 TensorCores per chip; shard the feature reduction across them."""
    try:
        kind = jax.devices()[0].device_kind.lower()
    except Exception:
        return 1
    return 2 if "v7" in kind else 1


def _pick_tile(d2, rows, itemsize_pair, requested, budget):
    """Lane-aligned feature tile targeting >=~4 MiB of input bytes per grid step."""
    if requested is not None:
        if requested >= d2:
            return d2
        return max(128, (requested // 128) * 128)
    per_lane = max(1, rows * itemsize_pair)
    target = (4 * 1024 * 1024) // per_lane          # amortize ~0.35us step overhead
    vmem_cap = budget // (2 * per_lane)             # double-buffered inputs fit budget
    tile = min(max(target, 512), max(128, vmem_cap))
    tile = max(128, (tile // 128) * 128)
    if d2 <= tile:
        return d2
    return tile


def soft_dice_loss(logits, targets, smooth=1.0, tile_d=None, num_cores=None):
    """Pallas TPU implementation of SoftDiceLoss.forward.

    logits, targets: same-shape arrays, leading dim = batch (e.g. NCHW).
    Returns a scalar float32 loss = 1 - mean dice score.
    """
    assert logits.shape == targets.shape, (logits.shape, targets.shape)
    num = int(logits.shape[0])
    d = 1
    for s in logits.shape[1:]:
        d *= int(s)

    # Split each sample's D contiguous features into R sub-rows (free reshape)
    # so the (rows, tile) blocks fill all 8 sublanes even for tiny batches.
    r = _pick_subrows(num, d)
    rows = num * r
    d2 = d // r

    l2 = logits.reshape(rows, d2)    # native dtype, no upcast / no pad copy
    t2 = targets.reshape(rows, d2)

    itemsize_pair = logits.dtype.itemsize + targets.dtype.itemsize
    phys_cap = _physical_vmem_bytes()
    budget = _vmem_budget_bytes(phys_cap)
    tile = _pick_tile(d2, rows, itemsize_pair, tile_d, budget)
    n_k = -(-d2 // tile)

    # Optional 2-TensorCore split (v7x); no effect on single-core chips.
    n_cores = int(num_cores) if num_cores else _num_tensorcores()
    n_cores = max(1, min(n_cores, n_k))
    nkpc = -(-n_k // n_cores)
    needs_mask = (n_cores * nkpc * tile) != d2

    if n_cores * nkpc == n_k:
        in_idx = lambda c, k: (0, c * nkpc + k)
    else:
        # Odd split: clamp the duplicated trailing chunk; its contribution is
        # zeroed by the in-kernel column mask.
        last = n_k - 1
        in_idx = lambda c, k: (0, jnp.minimum(c * nkpc + k, last))

    # Explicit scoped-VMEM limit: double-buffered input blocks + headroom.
    in_block_bytes = rows * tile * itemsize_pair
    vmem_limit = int(min(phys_cap,
                         max(48 * 1024 * 1024, 2 * in_block_bytes + 8 * 1024 * 1024)))

    kernel = functools.partial(
        _soft_dice_kernel, nkpc=nkpc, tile_d=tile, d_valid=d2, needs_mask=needs_mask)

    acc = pl.pallas_call(
        kernel,
        out_shape=jax.ShapeDtypeStruct((n_cores, rows, 2), jnp.float32),
        grid_spec=pltpu.PrefetchScalarGridSpec(
            num_scalar_prefetch=0,
            grid=(n_cores, nkpc),
            in_specs=[
                pl.BlockSpec((rows, tile), in_idx),
                pl.BlockSpec((rows, tile), in_idx),
            ],
            out_specs=pl.BlockSpec((None, rows, 2), lambda c, k: (c, 0, 0)),
        ),
        compiler_params=pltpu.CompilerParams(
            dimension_semantics=("parallel", "arbitrary"),
            vmem_limit_bytes=vmem_limit,
        ),
    )(l2, t2)

    # Tiny epilogue: sum core partials, recombine sub-rows, dice score, 1 - mean.
    smooth = float(smooth)
    acc = jnp.sum(acc, axis=0)                            # (rows, 2)
    inter_s = jnp.sum(acc[:, 0].reshape(num, r), axis=1)  # per-sample intersection
    den_s = jnp.sum(acc[:, 1].reshape(num, r), axis=1)    # per-sample sum(p)+sum(t)
    score = 2.0 * (inter_s + smooth) / (den_s + smooth)
    return 1.0 - jnp.sum(score) / num


def soft_dice_loss_ref(logits, targets, smooth=1.0):
    num = logits.shape[0]
    m1 = _sigmoid(logits.reshape(num, -1).astype(jnp.float32))
    m2 = targets.reshape(num, -1).astype(jnp.float32)
    inter = jnp.sum(m1 * m2, axis=1)
    score = 2.0 * (inter + smooth) / (jnp.sum(m1, axis=1) + jnp.sum(m2, axis=1) + smooth)
    return 1.0 - jnp.sum(score) / num


if __name__ == "__main__":
    key = jax.random.PRNGKey(0)
    k1, k2, k3, k4 = jax.random.split(key, 4)

    # Case 1: canonical small segmentation-head shape, f32 (N=2, C=4, H=W=16).
    logits = jax.random.normal(k1, (2, 4, 16, 16), dtype=jnp.float32)
    targets = (jax.random.uniform(k2, (2, 4, 16, 16)) > 0.5).astype(jnp.float32)
    out = jax.block_until_ready(soft_dice_loss(logits, targets, smooth=1.0))
    ref = soft_dice_loss_ref(logits, targets, smooth=1.0)
    assert jnp.allclose(out, ref, rtol=1e-5, atol=1e-5), (out, ref)

    # Case 2: feature length not divisible by the tile -> exercises the
    # edge-chunk lane mask (no jnp.pad copies) and the multi-chunk reduction.
    logits2 = jax.random.normal(k3, (2, 4, 16, 20), dtype=jnp.float32)
    targets2 = (jax.random.uniform(k4, (2, 4, 16, 20)) > 0.5).astype(jnp.float32)
    out2 = jax.block_until_ready(soft_dice_loss(logits2, targets2, smooth=1.0, tile_d=128))
    ref2 = soft_dice_loss_ref(logits2, targets2, smooth=1.0)
    assert jnp.allclose(out2, ref2, rtol=1e-5, atol=1e-5), (out2, ref2)

    # Case 3: bf16 inputs travel in native dtype (half the HBM traffic); the
    # kernel still accumulates in f32.
    lb = logits.astype(jnp.bfloat16)
    tb = targets.astype(jnp.bfloat16)
    out3 = jax.block_until_ready(soft_dice_loss(lb, tb, smooth=1.0))
    ref3 = soft_dice_loss_ref(lb, tb, smooth=1.0)
    assert jnp.allclose(out3, ref3, rtol=1e-5, atol=1e-5), (out3, ref3)

    # Case 4: force the 2-core split path (per-core partial accumulators,
    # clamped odd chunk count) -- correct on any chip, sharded only on v7x.
    out4 = jax.block_until_ready(
        soft_dice_loss(logits2, targets2, smooth=1.0, tile_d=128, num_cores=2))
    assert jnp.allclose(out4, ref2, rtol=1e-5, atol=1e-5), (out4, ref2)

    print("KERNEL_OK")
</pallas_src>

<mosaic_0001>
module attributes {stable_mosaic.version = 11 : i64} {
  func.func @_soft_dice_kernel(%arg0: i32, %arg1: i32, %arg2: memref<8x256xf32, #tpu.memory_space<vmem>>, %arg3: memref<8x256xf32, #tpu.memory_space<vmem>>, %arg4: memref<1x8x2xf32, #tpu.memory_space<vmem>>) attributes {dimension_semantics = [#tpu.dimension_semantics<parallel>, #tpu.dimension_semantics<arbitrary>], iteration_bounds = array<i64: 1, 1>, scalar_prefetch = 0 : i64, scratch_operands = 0 : i64, tpu.core_type = #tpu.core_type<tc>, window_params = [{transform_indices = @transform_0, window_bounds = array<i64: 8, 256>}, {transform_indices = @transform_1, window_bounds = array<i64: 8, 256>}, {transform_indices = @transform_2, window_bounds = array<i64: 1, 8, 2>}]} {
    %c0_i32 = arith.constant 0 : i32
    %0 = arith.cmpi eq, %arg1, %c0_i32 : i32
    %1 = arith.extui %0 : i1 to i32
    %c0_i32_0 = arith.constant 0 : i32
    %2 = arith.cmpi ne, %1, %c0_i32_0 : i32
    scf.if %2 {
      %cst_19 = arith.constant 0.000000e+00 : f32
      %30 = vector.broadcast %cst_19 : f32 to vector<8x2xf32>
      %c0_20 = arith.constant 0 : index
      %c0_21 = arith.constant 0 : index
      %c0_22 = arith.constant 0 : index
      %31 = vector.load %arg4[%c0_20, %c0_21, %c0_22] : memref<1x8x2xf32, #tpu.memory_space<vmem>>, vector<1x8x2xf32>
      %32 = vector.shape_cast %31 : vector<1x8x2xf32> to vector<8x2xf32>
      %33 = vector.shape_cast %30 : vector<8x2xf32> to vector<1x8x2xf32>
      tpu.vector_store %arg4[%c0_20, %c0_21, %c0_22], %33 {strides = array<i32>} : memref<1x8x2xf32, #tpu.memory_space<vmem>>, vector<1x8x2xf32>,
    } else {
    }
    %c0 = arith.constant 0 : index
    %c0_1 = arith.constant 0 : index
    %3 = vector.load %arg2[%c0, %c0_1] : memref<8x256xf32, #tpu.memory_space<vmem>>, vector<8x256xf32>
    %cst = arith.constant 0.000000e+00 : f32
    %4 = vector.broadcast %cst : f32 to vector<8x256xf32>
    %5 = arith.subf %4, %3 : vector<8x256xf32>
    %6 = math.exp %5 : vector<8x256xf32>
    %cst_2 = arith.constant 1.000000e+00 : f32
    %7 = vector.broadcast %cst_2 : f32 to vector<8x256xf32>
    %8 = arith.addf %7, %6 : vector<8x256xf32>
    %cst_3 = arith.constant 1.000000e+00 : f32
    %9 = vector.broadcast %cst_3 : f32 to vector<8x256xf32>
    %10 = arith.divf %9, %8 : vector<8x256xf32>
    %c0_4 = arith.constant 0 : index
    %c0_5 = arith.constant 0 : index
    %11 = vector.load %arg3[%c0_4, %c0_5] : memref<8x256xf32, #tpu.memory_space<vmem>>, vector<8x256xf32>
    %c0_6 = arith.constant 0 : index
    %c0_7 = arith.constant 0 : index
    %c0_8 = arith.constant 0 : index
    %12 = vector.load %arg4[%c0_6, %c0_7, %c0_8] : memref<1x8x2xf32, #tpu.memory_space<vmem>>, vector<1x8x1xf32>
    %13 = vector.shape_cast %12 : vector<1x8x1xf32> to vector<8x1xf32>
    %14 = arith.mulf %10, %11 : vector<8x256xf32>
    %cst_9 = arith.constant dense<0.000000e+00> : vector<8xf32>
    %15 = vector.multi_reduction <add>, %14, %cst_9 [1] : vector<8x256xf32> to vector<8xf32>
    %16 = vector.shape_cast %15 : vector<8xf32> to vector<8x1xf32>
    %17 = arith.addf %13, %16 : vector<8x1xf32>
    %c0_10 = arith.constant 0 : index
    %c0_11 = arith.constant 0 : index
    %c0_12 = arith.constant 0 : index
    %18 = vector.load %arg4[%c0_10, %c0_11, %c0_12] : memref<1x8x2xf32, #tpu.memory_space<vmem>>, vector<1x8x1xf32>
    %19 = vector.shape_cast %18 : vector<1x8x1xf32> to vector<8x1xf32>
    %20 = vector.shape_cast %17 : vector<8x1xf32> to vector<1x8x1xf32>
    tpu.vector_store %arg4[%c0_10, %c0_11, %c0_12], %20 {strides = array<i32>} : memref<1x8x2xf32, #tpu.memory_space<vmem>>, vector<1x8x1xf32>,
    %c0_13 = arith.constant 0 : index
    %c0_14 = arith.constant 0 : index
    %c1 = arith.constant 1 : index
    %21 = vector.load %arg4[%c0_13, %c0_14, %c1] : memref<1x8x2xf32, #tpu.memory_space<vmem>>, vector<1x8x1xf32>
    %22 = vector.shape_cast %21 : vector<1x8x1xf32> to vector<8x1xf32>
    %23 = arith.addf %10, %11 : vector<8x256xf32>
    %cst_15 = arith.constant dense<0.000000e+00> : vector<8xf32>
    %24 = vector.multi_reduction <add>, %23, %cst_15 [1] : vector<8x256xf32> to vector<8xf32>
    %25 = vector.shape_cast %24 : vector<8xf32> to vector<8x1xf32>
    %26 = arith.addf %22, %25 : vector<8x1xf32>
    %c0_16 = arith.constant 0 : index
    %c0_17 = arith.constant 0 : index
    %c1_18 = arith.constant 1 : index
    %27 = vector.load %arg4[%c0_16, %c0_17, %c1_18] : memref<1x8x2xf32, #tpu.memory_space<vmem>>, vector<1x8x1xf32>
    %28 = vector.shape_cast %27 : vector<1x8x1xf32> to vector<8x1xf32>
    %29 = vector.shape_cast %26 : vector<8x1xf32> to vector<1x8x1xf32>
    tpu.vector_store %arg4[%c0_16, %c0_17, %c1_18], %29 {strides = array<i32>} : memref<1x8x2xf32, #tpu.memory_space<vmem>>, vector<1x8x1xf32>,
    return
  }
  func.func @transform_0(%arg0: i32, %arg1: i32) -> (i32, i32) {
    %c1_i32 = arith.constant 1 : i32
    %0 = arith.muli %arg0, %c1_i32 : i32
    %1 = arith.addi %0, %arg1 : i32
    %c0_i32 = arith.constant 0 : i32
    %c0_i32_0 = arith.constant 0 : i32
    return %c0_i32, %1 : i32, i32
  }
  func.func @transform_1(%arg0: i32, %arg1: i32) -> (i32, i32) {
    %c1_i32 = arith.constant 1 : i32
    %0 = arith.muli %arg0, %c1_i32 : i32
    %1 = arith.addi %0, %arg1 : i32
    %c0_i32 = arith.constant 0 : i32
    %c0_i32_0 = arith.constant 0 : i32
    return %c0_i32, %1 : i32, i32
  }
  func.func @transform_2(%arg0: i32, %arg1: i32) -> (i32, i32, i32) {
    %c0_i32 = arith.constant 0 : i32
    %c0_i32_0 = arith.constant 0 : i32
    %c0_i32_1 = arith.constant 0 : i32
    return %arg0, %c0_i32, %c0_i32_0 : i32, i32, i32
  }
}

</mosaic_0001>

<llo_original>
// kernel: tpu_custom_call.1
$region0: #{tpu_custom_call.1}
  #allocation0 [shape = 'u32[]', space=smem, size = 0x4, offset = 0x4, fixed_abs, tag = 'smem constant byte address 0x4 - core index']
  #allocation1 [shape = 'u32[72,128]{1,0:T(1,128)}', space=vmem, size = 0x9000, scoped, tag = 'internal scratch']
  %s0 = inlined_call_operand.hbm [shape: f32[8,256], index: 0, kind: input, shape index: {}]
  %s1 = inlined_call_operand.hbm [shape: f32[8,256], index: 1, kind: input, shape index: {}]
  %s2 = inlined_call_operand.vmem [shape: f32[1,8,2], index: 2, kind: output, shape index: {}]
  %s3 = sld [smem:[#allocation0]]
  $region30: #{tpu_custom_call.1} parent=0
    _
  %s5 = ssub.s32 1, %s3
  %s6 = scalar_select 0, %s5, %s3
  $region1: #{tpu_custom_call.1} parent=0
    #allocation2 [shape = 'u8[8192]{0}', space=vmem, size = 0x2000, scoped, tag = 'input window, operand 0, single buffered']
    #allocation3 [shape = 's32[1]{0}', space=sflag, size = 0x4, scoped, tag = 'scoped memory for tpu_custom_call.1']
    #allocation4 [shape = 'u8[8192]{0}', space=vmem, size = 0x2000, scoped, tag = 'input window, operand 1, single buffered']
    #allocation5 [shape = 's32[1]{0}', space=sflag, size = 0x4, scoped, tag = 'scoped memory for tpu_custom_call.1']
    %7 = vsyncpa [#allocation3], 0
    %8 = vsyncpa [#allocation5], 0
    // Predicated region
    $region2: #{tpu_custom_call.1} parent=1 // pred_check
      _
    $region3: #{tpu_custom_call.1} parent=1 // pred_check_branch
      %10 = sbr.rel (0) target = $region5
    $region4: #{tpu_custom_call.1} parent=1 // pred_region
      %s11 = sadd.s32 0, 0
      %s12 = smul.u32 2, %s11
      %14 = vsyncadd [#allocation3], 0
      %s15 = smul.addr %s12, 8
      %s16 = scalar_lea.hbm %s0, %s15
      %s18 = sshll.u32 %s16, 4
      %s19 = int_to_ptr.hbm [resolvable:$true] %s18
      %s20 = sshll.u32 [#allocation2], 4
      %s21 = int_to_ptr.vmem [resolvable:$true] %s20
      %23 = dma.hbm_to_vmem [thread:$0]  %s19, 256, %s21, [#allocation3]
    $region5: #{tpu_custom_call.1} parent=1 // pred_fallthru
      _
    // Predicated region
    $region6: #{tpu_custom_call.1} parent=1 // pred_check
      _
    $region7: #{tpu_custom_call.1} parent=1 // pred_check_branch
      %25 = sbr.rel (0) target = $region9
    $region8: #{tpu_custom_call.1} parent=1 // pred_region
      %s26 = sadd.s32 0, 0
      %s27 = smul.u32 2, %s26
      %29 = vsyncadd [#allocation5], 0
      %s30 = smul.addr %s27, 8
      %s31 = scalar_lea.hbm %s1, %s30
      %s33 = sshll.u32 %s31, 4
      %s34 = int_to_ptr.hbm [resolvable:$true] %s33
      %s35 = sshll.u32 [#allocation4], 4
      %s36 = int_to_ptr.vmem [resolvable:$true] %s35
      %38 = dma.hbm_to_vmem [thread:$0]  %s34, 256, %s36, [#allocation5]
    $region9: #{tpu_custom_call.1} parent=1 // pred_fallthru
      _
    // Predicated region
    $region10: #{tpu_custom_call.1} parent=1 // pred_check
      _
    $region11: #{tpu_custom_call.1} parent=1 // pred_check_branch
      %40 = sbr.rel (0) target = $region13
    $region12: #{tpu_custom_call.1} parent=1 // pred_region
      %42 = dma.done [#allocation3], 256
    $region13: #{tpu_custom_call.1} parent=1 // pred_fallthru
      _
    // Predicated region
    $region14: #{tpu_custom_call.1} parent=1 // pred_check
      _
    $region15: #{tpu_custom_call.1} parent=1 // pred_check_branch
      %44 = sbr.rel (0) target = $region17
    $region16: #{tpu_custom_call.1} parent=1 // pred_region
      %46 = dma.done [#allocation5], 256
    $region17: #{tpu_custom_call.1} parent=1 // pred_fallthru
      _
    %s47 = sadd.s32 0, 0
    %s48 = smul.u32 2, %s47
    %s49 = sadd.s32 0, 0
    %s50 = smul.u32 2, %s49
    %p51 = scmp.eq.s32.totalorder 0, 0
    // Predicated region
    $region18: #{tpu_custom_call.1} parent=1 // pred_check
      %p52 = pneg %p51
    $region19: #{tpu_custom_call.1} parent=1 // pred_check_branch
      %54 = sbr.rel (%p52) target = $region21
    $region20: #{tpu_custom_call.1} parent=1 // pred_region
      %vm55 = vcmask 15360
      %56 = vst.msk [vmem:[%s2] sm:$0xff] %vm55, 0.0
    $region21: #{tpu_custom_call.1} parent=1 // pred_fallthru
      _
    %v57 = vld [vmem:[#allocation2] sm:$0xff]
    %v58 = vld [vmem:[#allocation2 + $0x8] sm:$0xff]
    %v59 = vsub.f32 0.0, %v57
    %v60 = vsub.f32 0.0, %v58
    %v61 = vmul.f32 %v59, 1.442695
    %v62 = vpow.pop %v61
    %v63 = vmul.f32 %v60, 1.442695
    %v64 = vpow.pop %v63
    %v65 = vadd.f32 %v62, 1.0
    %v66 = vadd.f32 %v64, 1.0
    %v67 = vrcp.pop %v65
    %v68 = vmul.f32 %v65, %v67
    %v69 = vsub.f32 1.0, %v68
    %v70 = vmul.f32 %v67, %v69
    %v71 = vadd.f32 %v67, %v70
    %vm72 = vweird.f32 %v65
    %vm73 = vweird.f32 %v67
    %vm74 = vmor %vm72, %vm73
    %v75 = vsel %vm74, %v67, %v71
    %v76 = vand.u32 2147483647, %v65
    %vm77 = vcmp.eq.f32.partialorder %v76, 8.507059e+37
    %v78 = vand.u32 %v65, 2147483648
    %v79 = vor.u32 1.1754944e-38, %v78
    %v80 = vsel %vm77, %v79, %v75
    %v81 = vmul.f32 1.0, %v80
    %v82 = vrcp.pop %v66
    %v83 = vmul.f32 %v66, %v82
    %v84 = vsub.f32 1.0, %v83
    %v85 = vmul.f32 %v82, %v84
    %v86 = vadd.f32 %v82, %v85
    %vm87 = vweird.f32 %v66
    %vm88 = vweird.f32 %v82
    %vm89 = vmor %vm87, %vm88
    %v90 = vsel %vm89, %v82, %v86
    %v91 = vand.u32 2147483647, %v66
    %vm92 = vcmp.eq.f32.partialorder %v91, 8.507059e+37
    %v93 = vand.u32 %v66, 2147483648
    %v94 = vor.u32 1.1754944e-38, %v93
    %v95 = vsel %vm92, %v94, %v90
    %v96 = vmul.f32 1.0, %v95
    %v97 = vld [vmem:[#allocation4] sm:$0xff]
    %v98 = vld [vmem:[#allocation4 + $0x8] sm:$0xff]
    %v99 = vld [vmem:[%s2] sm:$0xff]
    %v100 = vmul.f32 %v81, %v97
    %v101 = vmul.f32 %v96, %v98
    %v102 = vadd.f32 %v100, %v101
    %103 = vadd.xlane.f32.xlu0 %v102
    %v104 = vpop.xlane.xlu0 %103
    %v105 = vadd.f32 %v99, %v104
    %vm106 = vcmask 7168
    %107 = vst.msk [vmem:[%s2] sm:$0xff] %vm106, %v105
    %v108 = vld [vmem:[%s2] sm:$0xff]
    %v109 = vadd.f32 %v81, %v97
    %v110 = vadd.f32 %v96, %v98
    %v111 = vadd.f32 %v109, %v110
    %112 = vadd.xlane.f32.xlu0 %v111
    %v113 = vpop.xlane.xlu0 %112
    %v114 = vadd.f32 %v108, %v113
    %vm115 = vcmask 15368
    %116 = vst.msk [vmem:[%s2] sm:$0xff] %vm115, %v114
    // Predicated region
    $region22: #{tpu_custom_call.1} parent=1 // pred_check
      _
    $region23: #{tpu_custom_call.1} parent=1 // pred_check_branch
      %118 = sbr.rel (0) target = $region25
    $region24: #{tpu_custom_call.1} parent=1 // pred_region
      _
    $region25: #{tpu_custom_call.1} parent=1 // pred_fallthru
      _
    // Predicated region
    $region26: #{tpu_custom_call.1} parent=1 // pred_check
      _
    $region27: #{tpu_custom_call.1} parent=1 // pred_check_branch
      %120 = sbr.rel (0) target = $region29
    $region28: #{tpu_custom_call.1} parent=1 // pred_region
      _
    $region29: #{tpu_custom_call.1} parent=1 // pred_fallthru
      _
    %121 = vsyncpa [#allocation3], 1
    %122 = vsyncpa [#allocation5], 1

</llo_original>
